<compile_context>
chip_gen: v7x
topology: tpu7x:2x2x1
jax: 0.10.0
libtpu: 0.0.40
codegen_flags: <defaults>
</compile_context>

<pallas_src>
import jax
import jax.numpy as jnp
from jax.experimental import pallas as pl
from jax.experimental.pallas import tpu as pltpu

DIM = 3        # fixed by Conv2d(3, 3, ...) inside the module
HIDDEN = 64
EPS = 1e-6
P_HIGH = jax.lax.Precision.HIGHEST


# --------------------------------------------------------------------------
# Kernel 1: AFT-simple attention in the transposed (tokens-on-lanes) layout.
#   x_ref : (TB, C, N)   -- x^T per image
#   o_ref : (TB, C, N)   -- y^T per image
# --------------------------------------------------------------------------
def _aft_attn_kernel(x_ref, wqkv_ref, bqkv_ref, wo_ref, bo_ref, o_ref):
    wqkv = wqkv_ref[...]            # (3*HIDDEN, C)  = [wq|wk|wv]^T
    bqkv = bqkv_ref[...]            # (3*HIDDEN, 1)
    wo = wo_ref[...]                # (C, HIDDEN)
    bo = bo_ref[...]                # (C, 1)
    tb = x_ref.shape[0]             # static batch block (small) -> unrolled
    for b in range(tb):
        x = x_ref[b]                                                 # (C, N)
        # Fused q/k/v projection: one MXU push instead of three.
        qkv = jnp.dot(wqkv, x, preferred_element_type=jnp.float32) + bqkv   # (192, N)
        q = qkv[0:HIDDEN]
        k = qkv[HIDDEN:2 * HIDDEN]
        v = qkv[2 * HIDDEN:3 * HIDDEN]

        # softmax over the token (lane) axis == torch.softmax(k, dim=1)
        k_max = jnp.max(k, axis=-1, keepdims=True)                   # (64, 1)
        k_exp = jnp.exp(k - k_max)                                   # (64, N)
        denom = jnp.sum(k_exp, axis=-1, keepdims=True)               # (64, 1)
        # Normalize the context once per hidden unit (64 exact divides) instead
        # of dividing the full (64, N) softmax matrix.  NOTE: must be an exact
        # divide -- the approximate EUP reciprocal's error gets amplified by
        # the downstream 3-channel LayerNorm into ~1e-2 output error.
        ctx = jnp.sum(k_exp * v, axis=-1, keepdims=True) / denom     # (64, 1)

        y = jax.nn.sigmoid(q) * ctx                                  # (64, N)
        o_ref[b] = jnp.dot(wo, y, preferred_element_type=jnp.float32) + bo  # (C, N)


# --------------------------------------------------------------------------
# Kernel 2: Conv2d(3, 3, k=4, s=4) as a patch matmul, fused with
# channels_first LayerNorm, in the transposed (patches-on-lanes) layout.
#   p_ref : (48, TM) patch columns;  o_ref : (3, TM)
# --------------------------------------------------------------------------
def _conv_ln_kernel(p_ref, wc_ref, bc_ref, g_ref, bt_ref, o_ref):
    y = jnp.dot(wc_ref[...], p_ref[...],
                preferred_element_type=jnp.float32) + bc_ref[...]    # (3, TM)
    u = jnp.mean(y, axis=0, keepdims=True)                           # (1, TM)
    s = jnp.mean((y - u) * (y - u), axis=0, keepdims=True)           # (1, TM)
    yn = (y - u) * jax.lax.rsqrt(s + EPS)                            # rsqrt, not /sqrt
    o_ref[...] = g_ref[...] * yn + bt_ref[...]


# --------------------------------------------------------------------------
# Tiling heuristics
# --------------------------------------------------------------------------
def _pick_batch_block(B):
    # Batch several images per grid step to amortize the ~0.35us/step pipeline
    # overhead, but keep >= 2 grid steps where possible so the 'parallel' grid
    # axis can shard across v7x's two TensorCores.
    for tb in (8, 4, 2):
        if B % tb == 0 and B // tb >= 2:
            return tb
    return 1


def _pick_m_tile(M):
    # Lane-dense tiles over the patch axis; prefer large tiles (>=512 reaches
    # 85%+ of HBM roofline).  Fall back to a single full-width block when M is
    # not a multiple of 128.
    for t in (2048, 1024, 512, 256, 128):
        if M % t == 0:
            return t
    return M


# --------------------------------------------------------------------------
# Wrapper (JAX glue: weight packing, relayouts, mask downsample)
# --------------------------------------------------------------------------
def aft_simple_forward(x, mask, params):
    wq, bq, wk, bk, wv, bv, wo, bo, wc, bc, g, bt = params
    B, C, H, W = x.shape
    assert C == DIM
    assert H % 4 == 0 and W % 4 == 0
    N = H * W
    Ho, Wo = H // 4, W // 4
    M = B * Ho * Wo

    # Pack weights for the transposed kernels (in a real model these would be
    # pre-packed once, not per call).
    wqkv_t = jnp.concatenate([wq, wk, wv], axis=1).T.astype(jnp.float32)   # (192, 3)
    bqkv_t = jnp.concatenate([bq, bk, bv], axis=1).T.astype(jnp.float32)   # (192, 1)
    wo_t = wo.T.astype(jnp.float32)                                        # (3, 64)
    bo_t = bo.reshape(DIM, 1).astype(jnp.float32)                          # (3, 1)
    wc_mat = wc.reshape(DIM, DIM * 16).astype(jnp.float32)                 # (3, 48)
    bc_t = bc.reshape(DIM, 1).astype(jnp.float32)
    g_t = g.reshape(DIM, 1).astype(jnp.float32)
    bt_t = bt.reshape(DIM, 1).astype(jnp.float32)

    # torch: x.reshape(B, -1, C) (raw NCHW reinterpret); transpose so the token
    # axis lands on lanes inside the kernel.
    xt = x.reshape(B, N, C).transpose(0, 2, 1).astype(jnp.float32)         # (B, 3, N)

    TB = _pick_batch_block(B)
    attn_t = pl.pallas_call(
        _aft_attn_kernel,
        out_shape=jax.ShapeDtypeStruct((B, DIM, N), jnp.float32),
        grid_spec=pltpu.PrefetchScalarGridSpec(
            num_scalar_prefetch=0,
            grid=(B // TB,),
            in_specs=[
                pl.BlockSpec((TB, DIM, N), lambda b: (b, 0, 0)),
                pl.BlockSpec((3 * HIDDEN, DIM), lambda b: (0, 0)),
                pl.BlockSpec((3 * HIDDEN, 1), lambda b: (0, 0)),
                pl.BlockSpec((DIM, HIDDEN), lambda b: (0, 0)),
                pl.BlockSpec((DIM, 1), lambda b: (0, 0)),
            ],
            out_specs=pl.BlockSpec((TB, DIM, N), lambda b: (b, 0, 0)),
        ),
        compiler_params=pltpu.CompilerParams(dimension_semantics=("parallel",)),
    )(xt, wqkv_t, bqkv_t, wo_t, bo_t)
    # TODO(synk): for very large images (huge N) add a token-tiling grid axis
    # with an online-softmax accumulator (2-pass) so VMEM stays bounded on
    # v7x's 64 MiB; full-N blocks are fine at these sizes.

    # Relayout attn output (= y^T) into the (48, M) patch matrix (patches on
    # lanes).  This single XLA transpose chain implements the module's raw
    # (B,N,3) -> (B,C,H,W) view plus the 4x4 patchify; it is the only HBM
    # relayout between the two kernels.
    # TODO(synk): the raw-reshape channel interleave has no clean BlockSpec
    # gather, so this relayout stays in XLA rather than fused into a kernel.
    patches_t = (attn_t.transpose(0, 2, 1)          # (B, N, 3)  == y
                 .reshape(B, DIM, Ho, 4, Wo, 4)     # raw reshape to NCHW, split 4x4
                 .transpose(1, 3, 5, 0, 2, 4)       # (C, kh, kw, B, Ho, Wo)
                 .reshape(DIM * 16, M))             # (48, M)

    TM = _pick_m_tile(M)
    out_t = pl.pallas_call(
        _conv_ln_kernel,
        out_shape=jax.ShapeDtypeStruct((DIM, M), jnp.float32),
        grid_spec=pltpu.PrefetchScalarGridSpec(
            num_scalar_prefetch=0,
            grid=(M // TM,),
            in_specs=[
                pl.BlockSpec((DIM * 16, TM), lambda m: (0, m)),
                pl.BlockSpec((DIM, DIM * 16), lambda m: (0, 0)),
                pl.BlockSpec((DIM, 1), lambda m: (0, 0)),
                pl.BlockSpec((DIM, 1), lambda m: (0, 0)),
                pl.BlockSpec((DIM, 1), lambda m: (0, 0)),
            ],
            out_specs=pl.BlockSpec((DIM, TM), lambda m: (0, m)),
        ),
        compiler_params=pltpu.CompilerParams(dimension_semantics=("parallel",)),
    )(patches_t, wc_mat, bc_t, g_t, bt_t)

    out = out_t.reshape(DIM, B, Ho, Wo).transpose(1, 0, 2, 3)        # NCHW

    # F.interpolate(mask, size=(Ho, Wo)), mode='nearest' -> integer index gather.
    # TODO(synk): for non-divisible H/Ho PyTorch's float-scale nearest indexing
    # can differ from this integer floor in rare edge cases.
    hi = jnp.arange(Ho) * H // Ho
    wi = jnp.arange(Wo) * W // Wo
    mask_ds = mask[:, hi][:, :, wi]
    # TODO(synk): NestedTensor wrapper has no Pallas/JAX equivalent; return
    # plain (tensor, mask) tuples keyed like the PyTorch outs_dict.
    return {0: (out, mask_ds)}


# --------------------------------------------------------------------------
# Pure-JAX reference (for correctness check).  Pinned to HIGHEST precision so
# the comparison is against true-f32 math (the 3-channel LayerNorm amplifies
# any upstream relative error).
# --------------------------------------------------------------------------
def _reference(x, params):
    wq, bq, wk, bk, wv, bv, wo, bo, wc, bc, g, bt = params
    B, C, H, W = x.shape
    xs = x.reshape(B, -1, C)
    q = jnp.dot(xs, wq, precision=P_HIGH) + bq
    k = jnp.dot(xs, wk, precision=P_HIGH) + bk
    v = jnp.dot(xs, wv, precision=P_HIGH) + bv
    y = jax.nn.sigmoid(q) * jnp.sum(jax.nn.softmax(k, axis=1) * v, axis=1, keepdims=True)
    y = (jnp.dot(y, wo, precision=P_HIGH) + bo).reshape(B, C, H, W)
    out = jax.lax.conv_general_dilated(
        y, wc, window_strides=(4, 4), padding='VALID',
        dimension_numbers=('NCHW', 'OIHW', 'NCHW'), precision=P_HIGH)
    out = out + bc.reshape(1, C, 1, 1)
    u = out.mean(axis=1, keepdims=True)
    s = ((out - u) ** 2).mean(axis=1, keepdims=True)
    out = (out - u) / jnp.sqrt(s + EPS)
    return g.reshape(1, C, 1, 1) * out + bt.reshape(1, C, 1, 1)


def _init_params(key):
    ks = jax.random.split(key, 10)

    def uni(k, shape, fan_in):
        b = 1.0 / float(fan_in) ** 0.5
        return jax.random.uniform(k, shape, jnp.float32, -b, b)

    wq = uni(ks[0], (DIM, HIDDEN), DIM)
    bq = uni(ks[1], (1, HIDDEN), DIM)
    wk = uni(ks[2], (DIM, HIDDEN), DIM)
    bk = uni(ks[3], (1, HIDDEN), DIM)
    wv = uni(ks[4], (DIM, HIDDEN), DIM)
    bv = uni(ks[5], (1, HIDDEN), DIM)
    wo = uni(ks[6], (HIDDEN, DIM), HIDDEN)
    bo = uni(ks[7], (1, DIM), HIDDEN)
    wc = uni(ks[8], (DIM, DIM, 4, 4), DIM * 16)     # Conv2d weight (O, I, kH, kW)
    bc = uni(ks[9], (1, DIM), DIM * 16)             # Conv2d bias
    g = jnp.ones((1, DIM), jnp.float32)             # LayerNorm weight
    bt = jnp.zeros((1, DIM), jnp.float32)           # LayerNorm bias
    return (wq, bq, wk, bk, wv, bv, wo, bo, wc, bc, g, bt)


if __name__ == "__main__":
    key = jax.random.PRNGKey(0)
    k_param, k_x = jax.random.split(key)
    params = _init_params(k_param)

    B, C, H, W = 2, 3, 16, 16
    x = jax.random.normal(k_x, (B, C, H, W), jnp.float32)
    mask = jnp.zeros((B, H, W), jnp.bool_)

    fwd = jax.jit(aft_simple_forward)
    outs = fwd(x, mask, params)
    out, mask_ds = outs[0]
    out = jax.block_until_ready(out)
    mask_ds = jax.block_until_ready(mask_ds)

    ref = _reference(x, params)
    assert out.shape == (B, C, H // 4, W // 4), out.shape
    assert mask_ds.shape == (B, H // 4, W // 4), mask_ds.shape
    # With the exact softmax divide, residual error is f32 rounding amplified by
    # the 3-channel LayerNorm (~1e-5 level); 2e-3 gives comfortable margin while
    # still catching real semantic bugs.
    err = float(jnp.max(jnp.abs(out - ref)))
    assert jnp.allclose(out, ref, atol=2e-3, rtol=2e-3), err

    print("KERNEL_OK")
</pallas_src>

<mosaic_0001>
module attributes {stable_mosaic.version = 11 : i64} {
  func.func @_aft_attn_kernel(%arg0: i32, %arg1: memref<1x3x256xf32, #tpu.memory_space<vmem>>, %arg2: memref<192x3xf32, #tpu.memory_space<vmem>>, %arg3: memref<192x1xf32, #tpu.memory_space<vmem>>, %arg4: memref<3x64xf32, #tpu.memory_space<vmem>>, %arg5: memref<3x1xf32, #tpu.memory_space<vmem>>, %arg6: memref<1x3x256xf32, #tpu.memory_space<vmem>>) attributes {dimension_semantics = [#tpu.dimension_semantics<parallel>], iteration_bounds = array<i64: 2>, scalar_prefetch = 0 : i64, scratch_operands = 0 : i64, tpu.core_type = #tpu.core_type<tc>, window_params = [{transform_indices = @transform_0, window_bounds = array<i64: 1, 3, 256>}, {pipeline_mode = #tpu.pipeline_mode<synchronous>, transform_indices = @transform_1, window_bounds = array<i64: 192, 3>}, {pipeline_mode = #tpu.pipeline_mode<synchronous>, transform_indices = @transform_2, window_bounds = array<i64: 192, 1>}, {pipeline_mode = #tpu.pipeline_mode<synchronous>, transform_indices = @transform_3, window_bounds = array<i64: 3, 64>}, {pipeline_mode = #tpu.pipeline_mode<synchronous>, transform_indices = @transform_4, window_bounds = array<i64: 3, 1>}, {transform_indices = @transform_5, window_bounds = array<i64: 1, 3, 256>}]} {
    %c0 = arith.constant 0 : index
    %c0_0 = arith.constant 0 : index
    %0 = vector.load %arg2[%c0, %c0_0] : memref<192x3xf32, #tpu.memory_space<vmem>>, vector<192x3xf32>
    %c0_1 = arith.constant 0 : index
    %c0_2 = arith.constant 0 : index
    %1 = vector.load %arg3[%c0_1, %c0_2] : memref<192x1xf32, #tpu.memory_space<vmem>>, vector<192x1xf32>
    %c0_3 = arith.constant 0 : index
    %c0_4 = arith.constant 0 : index
    %2 = vector.load %arg4[%c0_3, %c0_4] : memref<3x64xf32, #tpu.memory_space<vmem>>, vector<3x64xf32>
    %c0_5 = arith.constant 0 : index
    %c0_6 = arith.constant 0 : index
    %3 = vector.load %arg5[%c0_5, %c0_6] : memref<3x1xf32, #tpu.memory_space<vmem>>, vector<3x1xf32>
    %c0_7 = arith.constant 0 : index
    %c0_8 = arith.constant 0 : index
    %c0_9 = arith.constant 0 : index
    %4 = vector.load %arg1[%c0_7, %c0_8, %c0_9] : memref<1x3x256xf32, #tpu.memory_space<vmem>>, vector<1x3x256xf32>
    %5 = vector.shape_cast %4 : vector<1x3x256xf32> to vector<3x256xf32>
    %cst = arith.constant dense<0.000000e+00> : vector<192x256xf32>
    %6 = tpu.matmul %0, %5, %cst {dimension_numbers = #tpu.dot_dimension_numbers<[1], [0], [0], [1], [0, 0, 1, 1], [], []>} : vector<192x3xf32>, vector<3x256xf32>, vector<192x256xf32> -> vector<192x256xf32>
    %7 = vector.broadcast %1 : vector<192x1xf32> to vector<192x256xf32>
    %8 = arith.addf %6, %7 : vector<192x256xf32>
    %9 = vector.extract_strided_slice %8 {offsets = [0, 0], sizes = [64, 256], strides = [1, 1]} : vector<192x256xf32> to vector<64x256xf32>
    %10 = vector.extract_strided_slice %8 {offsets = [64, 0], sizes = [64, 256], strides = [1, 1]} : vector<192x256xf32> to vector<64x256xf32>
    %11 = vector.extract_strided_slice %8 {offsets = [128, 0], sizes = [64, 256], strides = [1, 1]} : vector<192x256xf32> to vector<64x256xf32>
    %cst_10 = arith.constant dense<0xFF800000> : vector<64xf32>
    %12 = vector.multi_reduction <maximumf>, %10, %cst_10 [1] : vector<64x256xf32> to vector<64xf32>
    %13 = vector.shape_cast %12 : vector<64xf32> to vector<64x1xf32>
    %14 = vector.broadcast %13 : vector<64x1xf32> to vector<64x256xf32>
    %15 = arith.subf %10, %14 : vector<64x256xf32>
    %16 = math.exp %15 : vector<64x256xf32>
    %cst_11 = arith.constant dense<0.000000e+00> : vector<64xf32>
    %17 = vector.multi_reduction <add>, %16, %cst_11 [1] : vector<64x256xf32> to vector<64xf32>
    %18 = vector.shape_cast %17 : vector<64xf32> to vector<64x1xf32>
    %19 = arith.mulf %16, %11 : vector<64x256xf32>
    %cst_12 = arith.constant dense<0.000000e+00> : vector<64xf32>
    %20 = vector.multi_reduction <add>, %19, %cst_12 [1] : vector<64x256xf32> to vector<64xf32>
    %21 = vector.shape_cast %20 : vector<64xf32> to vector<64x1xf32>
    %22 = arith.divf %21, %18 : vector<64x1xf32>
    %23 = arith.negf %9 : vector<64x256xf32>
    %24 = math.exp %23 : vector<64x256xf32>
    %cst_13 = arith.constant 1.000000e+00 : f32
    %25 = vector.broadcast %cst_13 : f32 to vector<64x256xf32>
    %26 = arith.addf %25, %24 : vector<64x256xf32>
    %27 = arith.divf %25, %26 : vector<64x256xf32>
    %28 = vector.broadcast %22 : vector<64x1xf32> to vector<64x256xf32>
    %29 = arith.mulf %27, %28 : vector<64x256xf32>
    %cst_14 = arith.constant dense<0.000000e+00> : vector<3x256xf32>
    %30 = tpu.matmul %2, %29, %cst_14 {dimension_numbers = #tpu.dot_dimension_numbers<[1], [0], [0], [1], [0, 0, 1, 1], [], []>} : vector<3x64xf32>, vector<64x256xf32>, vector<3x256xf32> -> vector<3x256xf32>
    %31 = vector.broadcast %3 : vector<3x1xf32> to vector<3x256xf32>
    %32 = arith.addf %30, %31 : vector<3x256xf32>
    %c0_15 = arith.constant 0 : index
    %c0_16 = arith.constant 0 : index
    %c0_17 = arith.constant 0 : index
    %33 = vector.load %arg6[%c0_15, %c0_16, %c0_17] : memref<1x3x256xf32, #tpu.memory_space<vmem>>, vector<1x3x256xf32>
    %34 = vector.shape_cast %33 : vector<1x3x256xf32> to vector<3x256xf32>
    %35 = vector.shape_cast %32 : vector<3x256xf32> to vector<1x3x256xf32>
    tpu.vector_store %arg6[%c0_15, %c0_16, %c0_17], %35 {strides = array<i32>} : memref<1x3x256xf32, #tpu.memory_space<vmem>>, vector<1x3x256xf32>,
    return
  }
  func.func @transform_0(%arg0: i32) -> (i32, i32, i32) {
    %c0_i32 = arith.constant 0 : i32
    %c0_i32_0 = arith.constant 0 : i32
    %c0_i32_1 = arith.constant 0 : i32
    return %arg0, %c0_i32, %c0_i32_0 : i32, i32, i32
  }
  func.func @transform_1(%arg0: i32) -> (i32, i32) {
    %c0_i32 = arith.constant 0 : i32
    %c0_i32_0 = arith.constant 0 : i32
    %c0_i32_1 = arith.constant 0 : i32
    return %c0_i32, %c0_i32_0 : i32, i32
  }
  func.func @transform_2(%arg0: i32) -> (i32, i32) {
    %c0_i32 = arith.constant 0 : i32
    %c0_i32_0 = arith.constant 0 : i32
    %c0_i32_1 = arith.constant 0 : i32
    return %c0_i32, %c0_i32_0 : i32, i32
  }
  func.func @transform_3(%arg0: i32) -> (i32, i32) {
    %c0_i32 = arith.constant 0 : i32
    %c0_i32_0 = arith.constant 0 : i32
    %c0_i32_1 = arith.constant 0 : i32
    return %c0_i32, %c0_i32_0 : i32, i32
  }
  func.func @transform_4(%arg0: i32) -> (i32, i32) {
    %c0_i32 = arith.constant 0 : i32
    %c0_i32_0 = arith.constant 0 : i32
    %c0_i32_1 = arith.constant 0 : i32
    return %c0_i32, %c0_i32_0 : i32, i32
  }
  func.func @transform_5(%arg0: i32) -> (i32, i32, i32) {
    %c0_i32 = arith.constant 0 : i32
    %c0_i32_0 = arith.constant 0 : i32
    %c0_i32_1 = arith.constant 0 : i32
    return %arg0, %c0_i32, %c0_i32_0 : i32, i32, i32
  }
}

module attributes {stable_mosaic.version = 11 : i64} {
  func.func @_conv_ln_kernel(%arg0: i32, %arg1: memref<48x32xf32, #tpu.memory_space<vmem>>, %arg2: memref<3x48xf32, #tpu.memory_space<vmem>>, %arg3: memref<3x1xf32, #tpu.memory_space<vmem>>, %arg4: memref<3x1xf32, #tpu.memory_space<vmem>>, %arg5: memref<3x1xf32, #tpu.memory_space<vmem>>, %arg6: memref<3x32xf32, #tpu.memory_space<vmem>>) attributes {dimension_semantics = [#tpu.dimension_semantics<parallel>], iteration_bounds = array<i64: 1>, scalar_prefetch = 0 : i64, scratch_operands = 0 : i64, tpu.core_type = #tpu.core_type<tc>, window_params = [{transform_indices = @transform_0, window_bounds = array<i64: 48, 32>}, {pipeline_mode = #tpu.pipeline_mode<synchronous>, transform_indices = @transform_1, window_bounds = array<i64: 3, 48>}, {pipeline_mode = #tpu.pipeline_mode<synchronous>, transform_indices = @transform_2, window_bounds = array<i64: 3, 1>}, {pipeline_mode = #tpu.pipeline_mode<synchronous>, transform_indices = @transform_3, window_bounds = array<i64: 3, 1>}, {pipeline_mode = #tpu.pipeline_mode<synchronous>, transform_indices = @transform_4, window_bounds = array<i64: 3, 1>}, {transform_indices = @transform_5, window_bounds = array<i64: 3, 32>}]} {
    %c0 = arith.constant 0 : index
    %c0_0 = arith.constant 0 : index
    %0 = vector.load %arg2[%c0, %c0_0] : memref<3x48xf32, #tpu.memory_space<vmem>>, vector<3x48xf32>
    %c0_1 = arith.constant 0 : index
    %c0_2 = arith.constant 0 : index
    %1 = vector.load %arg1[%c0_1, %c0_2] : memref<48x32xf32, #tpu.memory_space<vmem>>, vector<48x32xf32>
    %cst = arith.constant dense<0.000000e+00> : vector<3x32xf32>
    %2 = tpu.matmul %0, %1, %cst {dimension_numbers = #tpu.dot_dimension_numbers<[1], [0], [0], [1], [0, 0, 1, 1], [], []>} : vector<3x48xf32>, vector<48x32xf32>, vector<3x32xf32> -> vector<3x32xf32>
    %c0_3 = arith.constant 0 : index
    %c0_4 = arith.constant 0 : index
    %3 = vector.load %arg3[%c0_3, %c0_4] : memref<3x1xf32, #tpu.memory_space<vmem>>, vector<3x1xf32>
    %4 = vector.broadcast %3 : vector<3x1xf32> to vector<3x32xf32>
    %5 = arith.addf %2, %4 : vector<3x32xf32>
    %cst_5 = arith.constant dense<0.000000e+00> : vector<32xf32>
    %6 = vector.multi_reduction <add>, %5, %cst_5 [0] : vector<3x32xf32> to vector<32xf32>
    %7 = vector.shape_cast %6 : vector<32xf32> to vector<1x32xf32>
    %cst_6 = arith.constant 3.000000e+00 : f32
    %8 = vector.broadcast %cst_6 : f32 to vector<1x32xf32>
    %9 = arith.divf %7, %8 : vector<1x32xf32>
    %10 = vector.broadcast %9 : vector<1x32xf32> to vector<3x32xf32>
    %11 = arith.subf %5, %10 : vector<3x32xf32>
    %12 = vector.broadcast %9 : vector<1x32xf32> to vector<3x32xf32>
    %13 = arith.subf %5, %12 : vector<3x32xf32>
    %14 = arith.mulf %11, %13 : vector<3x32xf32>
    %cst_7 = arith.constant dense<0.000000e+00> : vector<32xf32>
    %15 = vector.multi_reduction <add>, %14, %cst_7 [0] : vector<3x32xf32> to vector<32xf32>
    %16 = vector.shape_cast %15 : vector<32xf32> to vector<1x32xf32>
    %cst_8 = arith.constant 3.000000e+00 : f32
    %17 = vector.broadcast %cst_8 : f32 to vector<1x32xf32>
    %18 = arith.divf %16, %17 : vector<1x32xf32>
    %19 = vector.broadcast %9 : vector<1x32xf32> to vector<3x32xf32>
    %20 = arith.subf %5, %19 : vector<3x32xf32>
    %cst_9 = arith.constant 9.99999997E-7 : f32
    %21 = vector.broadcast %cst_9 : f32 to vector<1x32xf32>
    %22 = arith.addf %18, %21 : vector<1x32xf32>
    %23 = math.rsqrt %22 : vector<1x32xf32>
    %24 = vector.broadcast %23 : vector<1x32xf32> to vector<3x32xf32>
    %25 = arith.mulf %20, %24 : vector<3x32xf32>
    %c0_10 = arith.constant 0 : index
    %c0_11 = arith.constant 0 : index
    %26 = vector.load %arg4[%c0_10, %c0_11] : memref<3x1xf32, #tpu.memory_space<vmem>>, vector<3x1xf32>
    %27 = vector.broadcast %26 : vector<3x1xf32> to vector<3x32xf32>
    %28 = arith.mulf %27, %25 : vector<3x32xf32>
    %c0_12 = arith.constant 0 : index
    %c0_13 = arith.constant 0 : index
    %29 = vector.load %arg5[%c0_12, %c0_13] : memref<3x1xf32, #tpu.memory_space<vmem>>, vector<3x1xf32>
    %30 = vector.broadcast %29 : vector<3x1xf32> to vector<3x32xf32>
    %31 = arith.addf %28, %30 : vector<3x32xf32>
    %c0_14 = arith.constant 0 : index
    %c0_15 = arith.constant 0 : index
    %32 = vector.load %arg6[%c0_14, %c0_15] : memref<3x32xf32, #tpu.memory_space<vmem>>, vector<3x32xf32>
    tpu.vector_store %arg6[%c0_14, %c0_15], %31 {strides = array<i32>} : memref<3x32xf32, #tpu.memory_space<vmem>>, vector<3x32xf32>,
    return
  }
  func.func @transform_0(%arg0: i32) -> (i32, i32) {
    %c0_i32 = arith.constant 0 : i32
    %c0_i32_0 = arith.constant 0 : i32
    return %c0_i32, %arg0 : i32, i32
  }
  func.func @transform_1(%arg0: i32) -> (i32, i32) {
    %c0_i32 = arith.constant 0 : i32
    %c0_i32_0 = arith.constant 0 : i32
    %c0_i32_1 = arith.constant 0 : i32
    return %c0_i32, %c0_i32_0 : i32, i32
  }
  func.func @transform_2(%arg0: i32) -> (i32, i32) {
    %c0_i32 = arith.constant 0 : i32
    %c0_i32_0 = arith.constant 0 : i32
    %c0_i32_1 = arith.constant 0 : i32
    return %c0_i32, %c0_i32_0 : i32, i32
  }
  func.func @transform_3(%arg0: i32) -> (i32, i32) {
    %c0_i32 = arith.constant 0 : i32
    %c0_i32_0 = arith.constant 0 : i32
    %c0_i32_1 = arith.constant 0 : i32
    return %c0_i32, %c0_i32_0 : i32, i32
  }
  func.func @transform_4(%arg0: i32) -> (i32, i32) {
    %c0_i32 = arith.constant 0 : i32
    %c0_i32_0 = arith.constant 0 : i32
    %c0_i32_1 = arith.constant 0 : i32
    return %c0_i32, %c0_i32_0 : i32, i32
  }
  func.func @transform_5(%arg0: i32) -> (i32, i32) {
    %c0_i32 = arith.constant 0 : i32
    %c0_i32_0 = arith.constant 0 : i32
    return %c0_i32, %arg0 : i32, i32
  }
}

</mosaic_0001>

<llo_original>
// kernel: aft_simple_forward.2
$region0: #{aft_simple_forward.2}
  #allocation0 [shape = 'u32[]', space=smem, size = 0x4, offset = 0x4, fixed_abs, tag = 'smem constant byte address 0x4 - core index']
  #allocation1 [shape = 'u32[144,128]{1,0:T(1,128)}', space=vmem, size = 0x12000, scoped, tag = 'internal scratch']
  %s0 = inlined_call_operand.vmem [shape: f32[2,3,256], index: 0, kind: input, shape index: {}]
  %s1 = inlined_call_operand.vmem [shape: f32[192,3], index: 1, kind: input, shape index: {}]
  %s2 = inlined_call_operand.vmem [shape: f32[192,1], index: 2, kind: input, shape index: {}]
  %s3 = inlined_call_operand.vmem [shape: f32[3,64], index: 3, kind: input, shape index: {}]
  %s4 = inlined_call_operand.vmem [shape: f32[3,1], index: 4, kind: input, shape index: {}]
  %s5 = inlined_call_operand.vmem [shape: f32[2,3,256], index: 5, kind: output, shape index: {}]
  %s6 = sld [smem:[#allocation0]]
  $region53: #{aft_simple_forward.2} parent=0
    _
  %s8 = ssub.s32 1, %s6
  %s9 = scalar_select 0, %s8, %s6
  loop: start=0, step=1, limit=4
  $region2: #{aft_simple_forward.2} parent=0 // loop_pre_header
    _
  $region3: #{aft_simple_forward.2} parent=0 // loop_header
    %s11 = sphi 0, %s15
    %p12 = scmp.ge.s32.totalorder %s11, 4
    %s21 = sphi 0, %s23
    %s24 = sphi 0, %s21
    %s25 = sphi 0, %s24
    %s41 = sphi 0, %s25
    %s45 = sphi 0, %s45
    %s47 = sphi 0, %s45
    %s48 = sphi 0, %s47
    %s62 = sphi 0, %s48
    %s66 = sphi 0, %s66
    %s68 = sphi 0, %s66
    %s69 = sphi 0, %s68
    %s83 = sphi 0, %s69
    %s87 = sphi 0, %s87
    %s89 = sphi 0, %s87
    %s90 = sphi 0, %s89
    %s104 = sphi 0, %s90
    %s108 = sphi 0, %s108
    %s110 = sphi 0, %s108
    %s111 = sphi 0, %s110
    %s125 = sphi 0, %s111
    %s131 = sphi 0, %s133
    %s134 = sphi 0, %s131
    %s135 = sphi 0, %s134
    %s151 = sphi 0, %s135
  $region4: #{aft_simple_forward.2} parent=0 // loop_header_branch
    %14 = sbr.rel (%p12) target = $region8
  $region5: #{aft_simple_forward.2} parent=0 // loop_body
    %s16 = ssub.s32 %s11, 1
    %s17 = ssub.s32 %s11, 2
    %s18 = sadd.s32 %s11, 1
    %s19 = ssub.s32 %s11, %s18
    %p20 = scmp.eq.s32.totalorder %s19, 0
    %s22 = sadd.s32 %s21, 1
    %s23 = scalar_select %p20, %s21, %s22
    %p26 = pneg %p20
    %p27 = scmp.eq.s32.totalorder %s11, 1
    %p28 = por %p26, %p27
    %p29 = scmp.ne.s32.totalorder %s21, %s24
    %p30 = scmp.eq.s32.totalorder %s11, 0
    %p31 = por %p29, %p30
    %p32 = scmp.ne.s32.totalorder %s21, %s24
    %p33 = scmp.eq.s32.totalorder %s16, 1
    %p34 = por %p32, %p33
    %p35 = scmp.ne.s32.totalorder %s24, %s25
    %p36 = scmp.eq.s32.totalorder %s16, 0
    %p37 = por %p35, %p36
    %p38 = scmp.ne.s32.totalorder %s24, %s25
    %p39 = scmp.eq.s32.totalorder %s17, 1
    %p40 = por %p38, %p39
    %p42 = scmp.ne.s32.totalorder %s25, %s41
    %p43 = scmp.eq.s32.totalorder %s17, 0
    %p44 = por %p42, %p43
    %s46 = sadd.s32 %s45, 1
    %p49 = scmp.eq.s32.totalorder %s11, 1
    %p50 = scmp.ne.s32.totalorder %s45, %s47
    %p51 = scmp.eq.s32.totalorder %s11, 0
    %p52 = por %p50, %p51
    %p53 = scmp.ne.s32.totalorder %s45, %s47
    %p54 = scmp.eq.s32.totalorder %s16, 1
    %p55 = por %p53, %p54
    %p56 = scmp.ne.s32.totalorder %s47, %s48
    %p57 = scmp.eq.s32.totalorder %s16, 0
    %p58 = por %p56, %p57
    %p59 = scmp.ne.s32.totalorder %s47, %s48
    %p60 = scmp.eq.s32.totalorder %s17, 1
    %p61 = por %p59, %p60
    %p63 = scmp.ne.s32.totalorder %s48, %s62
    %p64 = scmp.eq.s32.totalorder %s17, 0
    %p65 = por %p63, %p64
    %s67 = sadd.s32 %s66, 1
    %p70 = scmp.eq.s32.totalorder %s11, 1
    %p71 = scmp.ne.s32.totalorder %s66, %s68
    %p72 = scmp.eq.s32.totalorder %s11, 0
    %p73 = por %p71, %p72
    %p74 = scmp.ne.s32.totalorder %s66, %s68
    %p75 = scmp.eq.s32.totalorder %s16, 1
    %p76 = por %p74, %p75
    %p77 = scmp.ne.s32.totalorder %s68, %s69
    %p78 = scmp.eq.s32.totalorder %s16, 0
    %p79 = por %p77, %p78
    %p80 = scmp.ne.s32.totalorder %s68, %s69
    %p81 = scmp.eq.s32.totalorder %s17, 1
    %p82 = por %p80, %p81
    %p84 = scmp.ne.s32.totalorder %s69, %s83
    %p85 = scmp.eq.s32.totalorder %s17, 0
    %p86 = por %p84, %p85
    %s88 = sadd.s32 %s87, 1
    %p91 = scmp.eq.s32.totalorder %s11, 1
    %p92 = scmp.ne.s32.totalorder %s87, %s89
    %p93 = scmp.eq.s32.totalorder %s11, 0
    %p94 = por %p92, %p93
    %p95 = scmp.ne.s32.totalorder %s87, %s89
    %p96 = scmp.eq.s32.totalorder %s16, 1
    %p97 = por %p95, %p96
    %p98 = scmp.ne.s32.totalorder %s89, %s90
    %p99 = scmp.eq.s32.totalorder %s16, 0
    %p100 = por %p98, %p99
    %p101 = scmp.ne.s32.totalorder %s89, %s90
    %p102 = scmp.eq.s32.totalorder %s17, 1
    %p103 = por %p101, %p102
    %p105 = scmp.ne.s32.totalorder %s90, %s104
    %p106 = scmp.eq.s32.totalorder %s17, 0
    %p107 = por %p105, %p106
    %s109 = sadd.s32 %s108, 1
    %p112 = scmp.eq.s32.totalorder %s11, 1
    %p113 = scmp.ne.s32.totalorder %s108, %s110
    %p114 = scmp.eq.s32.totalorder %s11, 0
    %p115 = por %p113, %p114
    %p116 = scmp.ne.s32.totalorder %s108, %s110
    %p117 = scmp.eq.s32.totalorder %s16, 1
    %p118 = por %p116, %p117
    %p119 = scmp.ne.s32.totalorder %s110, %s111
    %p120 = scmp.eq.s32.totalorder %s16, 0
    %p121 = por %p119, %p120
    %p122 = scmp.ne.s32.totalorder %s110, %s111
    %p123 = scmp.eq.s32.totalorder %s17, 1
    %p124 = por %p122, %p123
    %p126 = scmp.ne.s32.totalorder %s111, %s125
    %p127 = scmp.eq.s32.totalorder %s17, 0
    %p128 = por %p126, %p127
    %s129 = ssub.s32 %s11, %s18
    %p130 = scmp.eq.s32.totalorder %s129, 0
    %s132 = sadd.s32 %s131, 1
    %s133 = scalar_select %p130, %s131, %s132
    %p136 = pneg %p130
    %p137 = scmp.eq.s32.totalorder %s11, 1
    %p138 = por %p136, %p137
    %p139 = scmp.ne.s32.totalorder %s131, %s134
    %p140 = scmp.eq.s32.totalorder %s11, 0
    %p141 = por %p139, %p140
    %p142 = scmp.ne.s32.totalorder %s131, %s134
    %p143 = scmp.eq.s32.totalorder %s16, 1
    %p144 = por %p142, %p143
    %p145 = scmp.ne.s32.totalorder %s134, %s135
    %p146 = scmp.eq.s32.totalorder %s16, 0
    %p147 = por %p145, %p146
    %p148 = scmp.ne.s32.totalorder %s134, %s135
    %p149 = scmp.eq.s32.totalorder %s17, 1
    %p150 = por %p148, %p149
    %p152 = scmp.ne.s32.totalorder %s135, %s151
    %p153 = scmp.eq.s32.totalorder %s17, 0
    %p154 = por %p152, %p153
    %p155 = scmp.le.s32.totalorder 1, %s11
    %p156 = scmp.lt.s32.totalorder %s11, 3
    %p157 = pnand %p155, %p156
    %p158 = pneg %p157
    // Predicated region
    $region9: #{aft_simple_forward.2} parent=5 // pred_check
      _
    $region10: #{aft_simple_forward.2} parent=5 // pred_check_branch
      %160 = sbr.rel (%p157) target = $region12
    $region11: #{aft_simple_forward.2} parent=5 // pred_region
      %s161 = ssub.s32 %s11, 1
      // Predicated region
      $region13: #{aft_simple_forward.2} parent=11 // pred_check
        %p162 = pneg %p58
      $region14: #{aft_simple_forward.2} parent=11 // pred_check_branch
        %164 = sbr.rel (%p162) target = $region16
      $region15: #{aft_simple_forward.2} parent=11 // pred_region
        _
      $region16: #{aft_simple_forward.2} parent=11 // pred_fallthru
        _
      // Predicated region
      $region17: #{aft_simple_forward.2} parent=11 // pred_check
        %p165 = pneg %p79
      $region18: #{aft_simple_forward.2} parent=11 // pred_check_branch
        %167 = sbr.rel (%p165) target = $region20
      $region19: #{aft_simple_forward.2} parent=11 // pred_region
        _
      $region20: #{aft_simple_forward.2} parent=11 // pred_fallthru
        _
      // Predicated region
      $region21: #{aft_simple_forward.2} parent=11 // pred_check
        %p168 = pneg %p100
      $region22: #{aft_simple_forward.2} parent=11 // pred_check_branch
        %170 = sbr.rel (%p168) target = $region24
      $region23: #{aft_simple_forward.2} parent=11 // pred_region
        _
      $region24: #{aft_simple_forward.2} parent=11 // pred_fallthru
        _
      // Predicated region
      $region25: #{aft_simple_forward.2} parent=11 // pred_check
        %p171 = pneg %p121
      $region26: #{aft_simple_forward.2} parent=11 // pred_check_branch
        %173 = sbr.rel (%p171) target = $region28
      $region27: #{aft_simple_forward.2} parent=11 // pred_region
        _
      $region28: #{aft_simple_forward.2} parent=11 // pred_fallthru
        _
    $region12: #{aft_simple_forward.2} parent=5 // pred_fallthru
      _
    %p174 = scmp.lt.s32.totalorder %s11, 2
    // Predicated region
    $region29: #{aft_simple_forward.2} parent=5 // pred_check
      %p175 = pneg %p174
    $region30: #{aft_simple_forward.2} parent=5 // pred_check_branch
      %177 = sbr.rel (%p175) target = $region32
    $region31: #{aft_simple_forward.2} parent=5 // pred_region
      // Predicated region
      $region33: #{aft_simple_forward.2} parent=31 // pred_check
        %p178 = pneg %p31
      $region34: #{aft_simple_forward.2} parent=31 // pred_check_branch
        %180 = sbr.rel (%p178) target = $region36
      $region35: #{aft_simple_forward.2} parent=31 // pred_region
        %p181 = scmp.lt.s32.totalorder %s11, 1
        %s182 = scalar_select %p181, %s11, 1
        %s183 = smul.addr %s182, 2
        %s184 = smul.addr %s183, 4
        %s185 = scalar_lea.vmem %s0, %s184
      $region36: #{aft_simple_forward.2} parent=31 // pred_fallthru
        _
    $region32: #{aft_simple_forward.2} parent=5 // pred_fallthru
      _
    %p186 = scmp.le.s32.totalorder 1, %s11
    %p187 = scmp.lt.s32.totalorder %s11, 3
    %p188 = pnand %p186, %p187
    %p189 = pneg %p188
    // Predicated region
    $region37: #{aft_simple_forward.2} parent=5 // pred_check
      _
    $region38: #{aft_simple_forward.2} parent=5 // pred_check_branch
      %191 = sbr.rel (%p188) target = $region40
    $region39: #{aft_simple_forward.2} parent=5 // pred_region
      %s192 = ssub.s32 %s11, 1
      %p193 = scmp.lt.s32.totalorder %s16, 1
      %s194 = scalar_select %p193, %s16, 1
      %s195 = smul.addr %s194, 2
      %s196 = smul.addr %s195, 4
      %s197 = scalar_lea.vmem %s0, %s196
      %p198 = pneg %p37
      %p199 = pneg %p34
      %p200 = pneg %p58
      %p201 = pneg %p55
      %p202 = pneg %p79
      %p203 = pneg %p76
      %p204 = pneg %p100
      %p205 = pneg %p97
      %p206 = pneg %p121
      %p207 = pneg %p118
      %p208 = pneg %p147
      %p209 = pneg %p144
      %p210 = scmp.lt.s32.totalorder %s16, 1
      %s211 = scalar_select %p210, %s16, 1
      %s212 = smul.addr %s211, 2
      %s213 = smul.addr %s212, 4
      %s214 = scalar_lea.vmem %s5, %s213
      %p215 = scmp.lt.s32.totalorder %s16, 1
      %s216 = scalar_select %p215, %s16, 1
      %s217 = smul.addr %s216, 2
      %s218 = smul.addr %s217, 4
      %s219 = scalar_lea.vmem %s0, %s218
      %p220 = scmp.lt.s32.totalorder %s16, 1
      %s221 = scalar_select %p220, %s16, 1
      %s222 = smul.addr %s221, 2
      %s223 = smul.addr %s222, 4
      %s224 = scalar_lea.vmem %s5, %s223
      %v225 = vld [vmem:[%s1] sm:$0xff]
      %v226 = vld [vmem:[%s1 + $0x8] sm:$0xff]
      %v227 = vld [vmem:[%s1 + $0x10] sm:$0xff]
      %v228 = vld [vmem:[%s1 + $0x18] sm:$0xff]
      %v229 = vld [vmem:[%s1 + $0x20] sm:$0xff]
      %v230 = vld [vmem:[%s1 + $0x28] sm:$0xff]
      %v231 = vld [vmem:[%s1 + $0x30] sm:$0xff]
      %v232 = vld [vmem:[%s1 + $0x38] sm:$0xff]
      %v233 = vld [vmem:[%s1 + $0x40] sm:$0xff]
      %v234 = vld [vmem:[%s1 + $0x48] sm:$0xff]
      %v235 = vld [vmem:[%s1 + $0x50] sm:$0xff]
      %v236 = vld [vmem:[%s1 + $0x58] sm:$0xff]
      %v237 = vld [vmem:[%s1 + $0x60] sm:$0xff]
      %v238 = vld [vmem:[%s1 + $0x68] sm:$0xff]
      %v239 = vld [vmem:[%s1 + $0x70] sm:$0xff]
      %v240 = vld [vmem:[%s1 + $0x78] sm:$0xff]
      %v241 = vld [vmem:[%s1 + $0x80] sm:$0xff]
      %v242 = vld [vmem:[%s1 + $0x88] sm:$0xff]
      %v243 = vld [vmem:[%s1 + $0x90] sm:$0xff]
      %v244 = vld [vmem:[%s1 + $0x98] sm:$0xff]
      %v245 = vld [vmem:[%s1 + $0xa0] sm:$0xff]
      %v246 = vld [vmem:[%s1 + $0xa8] sm:$0xff]
      %v247 = vld [vmem:[%s1 + $0xb0] sm:$0xff]
      %v248 = vld [vmem:[%s1 + $0xb8] sm:$0xff]
      %v249 = vld [vmem:[%s2] sm:$0xff]
      %v250 = vld [vmem:[%s2 + $0x8] sm:$0xff]
      %v251 = vld [vmem:[%s2 + $0x10] sm:$0xff]
      %v252 = vld [vmem:[%s2 + $0x18] sm:$0xff]
      %v253 = vld [vmem:[%s2 + $0x20] sm:$0xff]
      %v254 = vld [vmem:[%s2 + $0x28] sm:$0xff]
      %v255 = vld [vmem:[%s2 + $0x30] sm:$0xff]
      %v256 = vld [vmem:[%s2 + $0x38] sm:$0xff]
      %v257 = vld [vmem:[%s2 + $0x40] sm:$0xff]
      %v258 = vld [vmem:[%s2 + $0x48] sm:$0xff]
      %v259 = vld [vmem:[%s2 + $0x50] sm:$0xff]
      %v260 = vld [vmem:[%s2 + $0x58] sm:$0xff]
      %v261 = vld [vmem:[%s2 + $0x60] sm:$0xff]
      %v262 = vld [vmem:[%s2 + $0x68] sm:$0xff]
      %v263 = vld [vmem:[%s2 + $0x70] sm:$0xff]
      %v264 = vld [vmem:[%s2 + $0x78] sm:$0xff]
      %v265 = vld [vmem:[%s2 + $0x80] sm:$0xff]
      %v266 = vld [vmem:[%s2 + $0x88] sm:$0xff]
      %v267 = vld [vmem:[%s2 + $0x90] sm:$0xff]
      %v268 = vld [vmem:[%s2 + $0x98] sm:$0xff]
      %v269 = vld [vmem:[%s2 + $0xa0] sm:$0xff]
      %v270 = vld [vmem:[%s2 + $0xa8] sm:$0xff]
      %v271 = vld [vmem:[%s2 + $0xb0] sm:$0xff]
      %v272 = vld [vmem:[%s2 + $0xb8] sm:$0xff]
      %v273 = vld [vmem:[%s3] sm:$0x7]
      %v274 = vld [vmem:[%s4] sm:$0x7]
      %v275 = vld [vmem:[%s219] sm:$0x77]
      %277 = vset.pattern.permute.xlu0 0
      %278 = vperm.xlu0 %277, %v249
      %v279 = vpop.permute.xlu0 %278
      %282 = vset.pattern.permute.xlu0 0
      %283 = vperm.xlu0 %282, %v250
      %v284 = vpop.permute.xlu0 %283
      %287 = vset.pattern.permute.xlu0 0
      %288 = vperm.xlu0 %287, %v251
      %v289 = vpop.permute.xlu0 %288
      %292 = vset.pattern.permute.xlu0 0
      %293 = vperm.xlu0 %292, %v252
      %v294 = vpop.permute.xlu0 %293
      %297 = vset.pattern.permute.xlu0 0
      %298 = vperm.xlu0 %297, %v253
      %v299 = vpop.permute.xlu0 %298
      %302 = vset.pattern.permute.xlu0 0
      %303 = vperm.xlu0 %302, %v254
      %v304 = vpop.permute.xlu0 %303
      %307 = vset.pattern.permute.xlu0 0
      %308 = vperm.xlu0 %307, %v255
      %v309 = vpop.permute.xlu0 %308
      %312 = vset.pattern.permute.xlu0 0
      %313 = vperm.xlu0 %312, %v256
      %v314 = vpop.permute.xlu0 %313
      %317 = vset.pattern.permute.xlu0 0
      %318 = vperm.xlu0 %317, %v257
      %v319 = vpop.permute.xlu0 %318
      %322 = vset.pattern.permute.xlu0 0
      %323 = vperm.xlu0 %322, %v258
      %v324 = vpop.permute.xlu0 %323
      %327 = vset.pattern.permute.xlu0 0
      %328 = vperm.xlu0 %327, %v259
      %v329 = vpop.permute.xlu0 %328
      %332 = vset.pattern.permute.xlu0 0
      %333 = vperm.xlu0 %332, %v260
      %v334 = vpop.permute.xlu0 %333
      %337 = vset.pattern.permute.xlu0 0
      %338 = vperm.xlu0 %337, %v261
      %v339 = vpop.permute.xlu0 %338
      %342 = vset.pattern.permute.xlu0 0
      %343 = vperm.xlu0 %342, %v262
      %v344 = vpop.permute.xlu0 %343
      %347 = vset.pattern.permute.xlu0 0
      %348 = vperm.xlu0 %347, %v263
      %v349 = vpop.permute.xlu0 %348
      %352 = vset.pattern.permute.xlu0 0
      %353 = vperm.xlu0 %352, %v264
      %v354 = vpop.permute.xlu0 %353
      %357 = vset.pattern.permute.xlu0 0
      %358 = vperm.xlu0 %357, %v265
      %v359 = vpop.permute.xlu0 %358
      %362 = vset.pattern.permute.xlu0 0
      %363 = vperm.xlu0 %362, %v266
      %v364 = vpop.permute.xlu0 %363
      %367 = vset.pattern.permute.xlu0 0
      %368 = vperm.xlu0 %367, %v267
      %v369 = vpop.permute.xlu0 %368
      %372 = vset.pattern.permute.xlu0 0
      %373 = vperm.xlu0 %372, %v268
      %v374 = vpop.permute.xlu0 %373
      %377 = vset.pattern.permute.xlu0 0
      %378 = vperm.xlu0 %377, %v269
      %v379 = vpop.permute.xlu0 %378
      %382 = vset.pattern.permute.xlu0 0
      %383 = vperm.xlu0 %382, %v270
      %v384 = vpop.permute.xlu0 %383
      %387 = vset.pattern.permute.xlu0 0
      %388 = vperm.xlu0 %387, %v271
      %v389 = vpop.permute.xlu0 %388
      %392 = vset.pattern.permute.xlu0 0
      %393 = vperm.xlu0 %392, %v272
      %v394 = vpop.permute.xlu0 %393
      %v397 = vcombine.high %v275, %v275
      %vm398 = vcmask 23552
      %v400 = vsel %vm398, %v225, 0
      %v403 = vsel %vm398, %v226, 0
      %v406 = vsel %vm398, %v227, 0
      %v409 = vsel %vm398, %v228, 0
      %v412 = vsel %vm398, %v229, 0
      %v415 = vsel %vm398, %v230, 0
      %v418 = vsel %vm398, %v231, 0
      %v421 = vsel %vm398, %v232, 0
      %v424 = vsel %vm398, %v233, 0
      %v427 = vsel %vm398, %v234, 0
      %v430 = vsel %vm398, %v235, 0
      %v433 = vsel %vm398, %v236, 0
      %v436 = vsel %vm398, %v237, 0
      %v439 = vsel %vm398, %v238, 0
      %v442 = vsel %vm398, %v239, 0
      %v445 = vsel %vm398, %v240, 0
      %v448 = vsel %vm398, %v241, 0
      %v451 = vsel %vm398, %v242, 0
      %v454 = vsel %vm398, %v243, 0
      %v457 = vsel %vm398, %v244, 0
      %v460 = vsel %vm398, %v245, 0
      %v463 = vsel %vm398, %v246, 0
      %v466 = vsel %vm398, %v247, 0
      %v469 = vsel %vm398, %v248, 0
      %vm471 = vcmask 1042432
      %v472 = vsel %vm471, %v275, 0
      %v474 = vsel %vm471, %v397, 0
      %476 = vmatprep.subr.mxu0 %v474
      %477 = vmatpush1.msra.mxu0 %v472
      %478 = vmatprep.subr.mxu0 0.0
      %479 = vmatpush1.msra.mxu0 0.0
      %480 = vmatprep.subr.mxu0 0.0
      %481 = vmatpush1.msra.mxu0 0.0
      %482 = vmatprep.subr.mxu0 0.0
      %483 = vmatpush1.msra.mxu0 0.0
      %484 = vmatprep.subr.mxu0 0.0
      %485 = vmatpush1.msra.mxu0 0.0
      %486 = vmatprep.subr.mxu0 0.0
      %487 = vmatpush1.msra.mxu0 0.0
      %488 = vmatprep.subr.mxu0 0.0
      %489 = vmatpush1.msra.mxu0 0.0
      %490 = vmatprep.subr.mxu0 0.0
      %491 = vmatpush1.msra.mxu0 0.0
      %492 = vmatprep.subr.mxu0 0.0
      %493 = vmatpush1.msra.mxu0 0.0
      %494 = vmatprep.subr.mxu0 0.0
      %495 = vmatpush1.msra.mxu0 0.0
      %496 = vmatprep.subr.mxu0 0.0
      %497 = vmatpush1.msra.mxu0 0.0
      %498 = vmatprep.subr.mxu0 0.0
      %499 = vmatpush1.msra.mxu0 0.0
      %500 = vmatprep.subr.mxu0 0.0
      %501 = vmatpush1.msra.mxu0 0.0
      %502 = vmatprep.subr.mxu0 0.0
      %503 = vmatpush1.msra.mxu0 0.0
      %504 = vmatprep.subr.mxu0 0.0
      %505 = vmatpush1.msra.mxu0 0.0
      %506 = vmatprep.subr.mxu0 0.0
      %507 = vmatpush1.msra.mxu0 0.0
      %508 = vmatprep.subr.mxu0 0.0
      %509 = vmatpush1.msra.mxu0 0.0
      %510 = vmatprep.subr.mxu0 0.0
      %511 = vmatpush1.msra.mxu0 0.0
      %512 = vmatprep.subr.mxu0 0.0
      %513 = vmatpush1.msra.mxu0 0.0
      %514 = vmatprep.subr.mxu0 0.0
      %515 = vmatpush1.msra.mxu0 0.0
      %516 = vmatprep.subr.mxu0 0.0
      %517 = vmatpush1.msra.mxu0 0.0
      %518 = vmatprep.subr.mxu0 0.0
      %519 = vmatpush1.msra.mxu0 0.0
      %520 = vmatprep.subr.mxu0 0.0
      %521 = vmatpush1.msra.mxu0 0.0
      %522 = vmatprep.subr.mxu0 0.0
      %523 = vmatpush1.msra.mxu0 0.0
      %524 = vmatprep.subr.mxu0 0.0
      %525 = vmatpush1.msra.mxu0 0.0
      %526 = vmatprep.subr.mxu0 0.0
      %527 = vmatpush1.msra.mxu0 0.0
      %528 = vmatprep.subr.mxu0 0.0
      %529 = vmatpush1.msra.mxu0 0.0
      %530 = vmatprep.subr.mxu0 0.0
      %531 = vmatpush1.msra.mxu0 0.0
      %532 = vmatprep.subr.mxu0 0.0
      %533 = vmatpush1.msra.mxu0 0.0
      %534 = vmatprep.subr.mxu0 0.0
      %535 = vmatpush1.msra.mxu0 0.0
      %536 = vmatprep.subr.mxu0 0.0
      %537 = vmatpush1.msra.mxu0 0.0
      %538 = vmatprep.subr.mxu0 0.0
      %539 = vmatpush1.msra.mxu0 0.0
      %540 = vmatprep.mubr.f32.mxu0 0.0
      %541 = vmatmul.mubr.f32.gmra.mrb[0].mxu0 %v400
      %v542 = vpop.f32.mrb[0].mxu0
      %v543 = vadd.f32 %v279, %v542
      %v544 = vpop.f32.mrb[0].mxu0
      %v545 = vadd.f32 %v279, %v544
      %546 = vmatprep.mubr.f32.mxu0 0.0
      %547 = vmatmul.mubr.f32.gmra.mrb[0].mxu0 %v403
      %v548 = vpop.f32.mrb[0].mxu0
      %v549 = vadd.f32 %v284, %v548
      %v550 = vpop.f32.mrb[0].mxu0
      %v551 = vadd.f32 %v284, %v550
      %552 = vmatprep.mubr.f32.mxu0 0.0
      %553 = vmatmul.mubr.f32.gmra.mrb[0].mxu0 %v406
      %v554 = vpop.f32.mrb[0].mxu0
      %v555 = vadd.f32 %v289, %v554
      %v556 = vpop.f32.mrb[0].mxu0
      %v557 = vadd.f32 %v289, %v556
      %558 = vmatprep.mubr.f32.mxu0 0.0
      %559 = vmatmul.mubr.f32.gmra.mrb[0].mxu0 %v409
      %v560 = vpop.f32.mrb[0].mxu0
      %v561 = vadd.f32 %v294, %v560
      %v562 = vpop.f32.mrb[0].mxu0
      %v563 = vadd.f32 %v294, %v562
      %564 = vmatprep.mubr.f32.mxu0 0.0
      %565 = vmatmul.mubr.f32.gmra.mrb[0].mxu0 %v412
      %v566 = vpop.f32.mrb[0].mxu0
      %v567 = vadd.f32 %v299, %v566
      %v568 = vpop.f32.mrb[0].mxu0
      %v569 = vadd.f32 %v299, %v568
      %570 = vmatprep.mubr.f32.mxu0 0.0
      %571 = vmatmul.mubr.f32.gmra.mrb[0].mxu0 %v415
      %v572 = vpop.f32.mrb[0].mxu0
      %v573 = vadd.f32 %v304, %v572
      %v574 = vpop.f32.mrb[0].mxu0
      %v575 = vadd.f32 %v304, %v574
      %576 = vmatprep.mubr.f32.mxu0 0.0
      %577 = vmatmul.mubr.f32.gmra.mrb[0].mxu0 %v418
      %v578 = vpop.f32.mrb[0].mxu0
      %v579 = vadd.f32 %v309, %v578
      %v580 = vpop.f32.mrb[0].mxu0
      %v581 = vadd.f32 %v309, %v580
      %582 = vmatprep.mubr.f32.mxu0 0.0
      %583 = vmatmul.mubr.f32.gmra.mrb[0].mxu0 %v421
      %v584 = vpop.f32.mrb[0].mxu0
      %v585 = vadd.f32 %v314, %v584
      %v586 = vpop.f32.mrb[0].mxu0
      %v587 = vadd.f32 %v314, %v586
      %588 = vmatprep.mubr.f32.mxu0 0.0
      %589 = vmatmul.mubr.f32.gmra.mrb[0].mxu0 %v424
      %v590 = vpop.f32.mrb[0].mxu0
      %v591 = vadd.f32 %v319, %v590
      %v592 = vpop.f32.mrb[0].mxu0
      %v593 = vadd.f32 %v319, %v592
      %594 = vmatprep.mubr.f32.mxu0 0.0
      %595 = vmatmul.mubr.f32.gmra.mrb[0].mxu0 %v427
      %v596 = vpop.f32.mrb[0].mxu0
      %v597 = vadd.f32 %v324, %v596
      %v598 = vpop.f32.mrb[0].mxu0
      %v599 = vadd.f32 %v324, %v598
      %600 = vmatprep.mubr.f32.mxu0 0.0
      %601 = vmatmul.mubr.f32.gmra.mrb[0].mxu0 %v430
      %v602 = vpop.f32.mrb[0].mxu0
      %v603 = vadd.f32 %v329, %v602
      %v604 = vpop.f32.mrb[0].mxu0
      %v605 = vadd.f32 %v329, %v604
      %606 = vmatprep.mubr.f32.mxu0 0.0
      %607 = vmatmul.mubr.f32.gmra.mrb[0].mxu0 %v433
      %v608 = vpop.f32.mrb[0].mxu0
      %v609 = vadd.f32 %v334, %v608
      %v610 = vpop.f32.mrb[0].mxu0
      %v611 = vadd.f32 %v334, %v610
      %612 = vmatprep.mubr.f32.mxu0 0.0
      %613 = vmatmul.mubr.f32.gmra.mrb[0].mxu0 %v436
      %v614 = vpop.f32.mrb[0].mxu0
      %v615 = vadd.f32 %v339, %v614
      %v616 = vpop.f32.mrb[0].mxu0
      %v617 = vadd.f32 %v339, %v616
      %618 = vmatprep.mubr.f32.mxu0 0.0
      %619 = vmatmul.mubr.f32.gmra.mrb[0].mxu0 %v439
      %v620 = vpop.f32.mrb[0].mxu0
      %v621 = vadd.f32 %v344, %v620
      %v622 = vpop.f32.mrb[0].mxu0
      %v623 = vadd.f32 %v344, %v622
      %624 = vmatprep.mubr.f32.mxu0 0.0
      %625 = vmatmul.mubr.f32.gmra.mrb[0].mxu0 %v442
      %v626 = vpop.f32.mrb[0].mxu0
      %v627 = vadd.f32 %v349, %v626
      %v628 = vpop.f32.mrb[0].mxu0
      %v629 = vadd.f32 %v349, %v628
      %630 = vmatprep.mubr.f32.mxu0 0.0
      %631 = vmatmul.mubr.f32.gmra.mrb[0].mxu0 %v445
      %v632 = vpop.f32.mrb[0].mxu0
      %v633 = vadd.f32 %v354, %v632
      %v634 = vpop.f32.mrb[0].mxu0
      %v635 = vadd.f32 %v354, %v634
      %636 = vmatprep.mubr.f32.mxu0 0.0
      %637 = vmatmul.mubr.f32.gmra.mrb[0].mxu0 %v448
      %v638 = vpop.f32.mrb[0].mxu0
      %v639 = vadd.f32 %v359, %v638
      %v640 = vpop.f32.mrb[0].mxu0
      %v641 = vadd.f32 %v359, %v640
      %642 = vmatprep.mubr.f32.mxu0 0.0
      %643 = vmatmul.mubr.f32.gmra.mrb[0].mxu0 %v451
      %v644 = vpop.f32.mrb[0].mxu0
      %v645 = vadd.f32 %v364, %v644
      %v646 = vpop.f32.mrb[0].mxu0
      %v647 = vadd.f32 %v364, %v646
      %648 = vmatprep.mubr.f32.mxu0 0.0
      %649 = vmatmul.mubr.f32.gmra.mrb[0].mxu0 %v454
      %v650 = vpop.f32.mrb[0].mxu0
      %v651 = vadd.f32 %v369, %v650
      %v652 = vpop.f32.mrb[0].mxu0
      %v653 = vadd.f32 %v369, %v652
      %654 = vmatprep.mubr.f32.mxu0 0.0
      %655 = vmatmul.mubr.f32.gmra.mrb[0].mxu0 %v457
      %v656 = vpop.f32.mrb[0].mxu0
      %v657 = vadd.f32 %v374, %v656
      %v658 = vpop.f32.mrb[0].mxu0
      %v659 = vadd.f32 %v374, %v658
      %660 = vmatprep.mubr.f32.mxu0 0.0
      %661 = vmatmul.mubr.f32.gmra.mrb[0].mxu0 %v460
      %v662 = vpop.f32.mrb[0].mxu0
      %v663 = vadd.f32 %v379, %v662
      %v664 = vpop.f32.mrb[0].mxu0
      %v665 = vadd.f32 %v379, %v664
      %666 = vmatprep.mubr.f32.mxu0 0.0
      %667 = vmatmul.mubr.f32.gmra.mrb[0].mxu0 %v463
      %v668 = vpop.f32.mrb[0].mxu0
      %v669 = vadd.f32 %v384, %v668
      %v670 = vpop.f32.mrb[0].mxu0
      %v671 = vadd.f32 %v384, %v670
      %672 = vmatprep.mubr.f32.mxu0 0.0
      %673 = vmatmul.mubr.f32.gmra.mrb[0].mxu0 %v466
      %v674 = vpop.f32.mrb[0].mxu0
      %v675 = vadd.f32 %v389, %v674
      %v676 = vpop.f32.mrb[0].mxu0
      %v677 = vadd.f32 %v389, %v676
      %678 = vmatprep.mubr.f32.mxu0 0.0
      %679 = vmatmul.mubr.f32.gmra.mrb[0].mxu0 %v469
      %v680 = vpop.f32.mrb[0].mxu0
      %v681 = vadd.f32 %v394, %v680
      %v682 = vpop.f32.mrb[0].mxu0
      %v683 = vadd.f32 %v394, %v682
      %684 = vdwg.mxu0
      %v685 = vmax.f32 %v591, %v593
      %686 = vmax.xlane.f32.xlu0 %v685
      %v687 = vpop.xlane.xlu0 %686
      %v688 = vmax.f32 %v597, %v599
      %689 = vmax.xlane.f32.xlu0 %v688
      %v690 = vpop.xlane.xlu0 %689
      %v691 = vmax.f32 %v603, %v605
      %692 = vmax.xlane.f32.xlu0 %v691
      %v693 = vpop.xlane.xlu0 %692
      %v694 = vmax.f32 %v609, %v611
      %695 = vmax.xlane.f32.xlu0 %v694
      %v696 = vpop.xlane.xlu0 %695
      %v697 = vmax.f32 %v615, %v617
      %698 = vmax.xlane.f32.xlu0 %v697
      %v699 = vpop.xlane.xlu0 %698
      %v700 = vmax.f32 %v621, %v623
      %701 = vmax.xlane.f32.xlu0 %v700
      %v702 = vpop.xlane.xlu0 %701
      %v703 = vmax.f32 %v627, %v629
      %704 = vmax.xlane.f32.xlu0 %v703
      %v705 = vpop.xlane.xlu0 %704
      %v706 = vmax.f32 %v633, %v635
      %707 = vmax.xlane.f32.xlu0 %v706
      %v708 = vpop.xlane.xlu0 %707
      %v709 = vsub.f32 %v591, %v687
      %v710 = vsub.f32 %v593, %v687
      %v711 = vsub.f32 %v597, %v690
      %v712 = vsub.f32 %v599, %v690
      %v713 = vsub.f32 %v603, %v693
      %v714 = vsub.f32 %v605, %v693
      %v715 = vsub.f32 %v609, %v696
      %v716 = vsub.f32 %v611, %v696
      %v717 = vsub.f32 %v615, %v699
      %v718 = vsub.f32 %v617, %v699
      %v719 = vsub.f32 %v621, %v702
      %v720 = vsub.f32 %v623, %v702
      %v721 = vsub.f32 %v627, %v705
      %v722 = vsub.f32 %v629, %v705
      %v723 = vsub.f32 %v633, %v708
      %v724 = vsub.f32 %v635, %v708
      %v725 = vmul.f32 %v709, 1.442695
      %v726 = vpow.pop %v725
      %v727 = vmul.f32 %v710, 1.442695
      %v728 = vpow.pop %v727
      %v729 = vmul.f32 %v711, 1.442695
      %v730 = vpow.pop %v729
      %v731 = vmul.f32 %v712, 1.442695
      %v732 = vpow.pop %v731
      %v733 = vmul.f32 %v713, 1.442695
      %v734 = vpow.pop %v733
      %v735 = vmul.f32 %v714, 1.442695
      %v736 = vpow.pop %v735
      %v737 = vmul.f32 %v715, 1.442695
      %v738 = vpow.pop %v737
      %v739 = vmul.f32 %v716, 1.442695
      %v740 = vpow.pop %v739
      %v741 = vmul.f32 %v717, 1.442695
      %v742 = vpow.pop %v741
      %v743 = vmul.f32 %v718, 1.442695
      %v744 = vpow.pop %v743
      %v745 = vmul.f32 %v719, 1.442695
      %v746 = vpow.pop %v745
      %v747 = vmul.f32 %v720, 1.442695
      %v748 = vpow.pop %v747
      %v749 = vmul.f32 %v721, 1.442695
      %v750 = vpow.pop %v749
      %v751 = vmul.f32 %v722, 1.442695
      %v752 = vpow.pop %v751
      %v753 = vmul.f32 %v723, 1.442695
      %v754 = vpow.pop %v753
      %v755 = vmul.f32 %v724, 1.442695
      %v756 = vpow.pop %v755
      %v757 = vadd.f32 %v726, %v728
      %758 = vadd.xlane.f32.xlu0 %v757
      %v759 = vpop.xlane.xlu0 %758
      %v760 = vadd.f32 %v730, %v732
      %761 = vadd.xlane.f32.xlu0 %v760
      %v762 = vpop.xlane.xlu0 %761
      %v763 = vadd.f32 %v734, %v736
      %764 = vadd.xlane.f32.xlu0 %v763
      %v765 = vpop.xlane.xlu0 %764
      %v766 = vadd.f32 %v738, %v740
      %767 = vadd.xlane.f32.xlu0 %v766
      %v768 = vpop.xlane.xlu0 %767
      %v769 = vadd.f32 %v742, %v744
      %770 = vadd.xlane.f32.xlu0 %v769
      %v771 = vpop.xlane.xlu0 %770
      %v772 = vadd.f32 %v746, %v748
      %773 = vadd.xlane.f32.xlu0 %v772
      %v774 = vpop.xlane.xlu0 %773
      %v775 = vadd.f32 %v750, %v752
      %776 = vadd.xlane.f32.xlu0 %v775
      %v777 = vpop.xlane.xlu0 %776
      %v778 = vadd.f32 %v754, %v756
      %779 = vadd.xlane.f32.xlu0 %v778
      %v780 = vpop.xlane.xlu0 %779
      %v781 = vmul.f32 %v726, %v639
      %v782 = vmul.f32 %v728, %v641
      %v783 = vmul.f32 %v730, %v645
      %v784 = vmul.f32 %v732, %v647
      %v785 = vmul.f32 %v734, %v651
      %v786 = vmul.f32 %v736, %v653
      %v787 = vmul.f32 %v738, %v657
      %v788 = vmul.f32 %v740, %v659
      %v789 = vmul.f32 %v742, %v663
      %v790 = vmul.f32 %v744, %v665
      %v791 = vmul.f32 %v746, %v669
      %v792 = vmul.f32 %v748, %v671
      %v793 = vmul.f32 %v750, %v675
      %v794 = vmul.f32 %v752, %v677
      %v795 = vmul.f32 %v754, %v681
      %v796 = vmul.f32 %v756, %v683
      %v797 = vadd.f32 %v781, %v782
      %798 = vadd.xlane.f32.xlu0 %v797
      %v799 = vpop.xlane.xlu0 %798
      %v800 = vadd.f32 %v783, %v784
      %801 = vadd.xlane.f32.xlu0 %v800
      %v802 = vpop.xlane.xlu0 %801
      %v803 = vadd.f32 %v785, %v786
      %804 = vadd.xlane.f32.xlu0 %v803
      %v805 = vpop.xlane.xlu0 %804
      %v806 = vadd.f32 %v787, %v788
      %807 = vadd.xlane.f32.xlu0 %v806
      %v808 = vpop.xlane.xlu0 %807
      %v809 = vadd.f32 %v789, %v790
      %810 = vadd.xlane.f32.xlu0 %v809
      %v811 = vpop.xlane.xlu0 %810
      %v812 = vadd.f32 %v791, %v792
      %813 = vadd.xlane.f32.xlu0 %v812
      %v814 = vpop.xlane.xlu0 %813
      %v815 = vadd.f32 %v793, %v794
      %816 = vadd.xlane.f32.xlu0 %v815
      %v817 = vpop.xlane.xlu0 %816
      %v818 = vadd.f32 %v795, %v796
      %819 = vadd.xlane.f32.xlu0 %v818
      %v820 = vpop.xlane.xlu0 %819
      %v821 = vrcp.pop %v759
      %v822 = vmul.f32 %v799, %v821
      %v823 = vrcp.pop %v762
      %v824 = vmul.f32 %v802, %v823
      %v825 = vrcp.pop %v765
      %v826 = vmul.f32 %v805, %v825
      %v827 = vrcp.pop %v768
      %v828 = vmul.f32 %v808, %v827
      %v829 = vrcp.pop %v771
      %v830 = vmul.f32 %v811, %v829
      %v831 = vrcp.pop %v774
      %v832 = vmul.f32 %v814, %v831
      %v833 = vrcp.pop %v777
      %v834 = vmul.f32 %v817, %v833
      %v835 = vrcp.pop %v780
      %v836 = vmul.f32 %v820, %v835
      %v837 = vxor.u32 %v543, 2147483648
      %v838 = vxor.u32 %v545, 2147483648
      %v839 = vxor.u32 %v549, 2147483648
      %v840 = vxor.u32 %v551, 2147483648
      %v841 = vxor.u32 %v555, 2147483648
      %v842 = vxor.u32 %v557, 2147483648
      %v843 = vxor.u32 %v561, 2147483648
      %v844 = vxor.u32 %v563, 2147483648
      %v845 = vxor.u32 %v567, 2147483648
      %v846 = vxor.u32 %v569, 2147483648
      %v847 = vxor.u32 %v573, 2147483648
      %v848 = vxor.u32 %v575, 2147483648
      %v849 = vxor.u32 %v579, 2147483648
      %v850 = vxor.u32 %v581, 2147483648
      %v851 = vxor.u32 %v585, 2147483648
      %v852 = vxor.u32 %v587, 2147483648
      %v853 = vmul.f32 %v837, 1.442695
      %v854 = vpow.pop %v853
      %v855 = vmul.f32 %v838, 1.442695
      %v856 = vpow.pop %v855
      %v857 = vmul.f32 %v839, 1.442695
      %v858 = vpow.pop %v857
      %v859 = vmul.f32 %v840, 1.442695
      %v860 = vpow.pop %v859
      %v861 = vmul.f32 %v841, 1.442695
      %v862 = vpow.pop %v861
      %v863 = vmul.f32 %v842, 1.442695
      %v864 = vpow.pop %v863
      %v865 = vmul.f32 %v843, 1.442695
      %v866 = vpow.pop %v865
      %v867 = vmul.f32 %v844, 1.442695
      %v868 = vpow.pop %v867
      %v869 = vmul.f32 %v845, 1.442695
      %v870 = vpow.pop %v869
      %v871 = vmul.f32 %v846, 1.442695
      %v872 = vpow.pop %v871
      %v873 = vmul.f32 %v847, 1.442695
      %v874 = vpow.pop %v873
      %v875 = vmul.f32 %v848, 1.442695
      %v876 = vpow.pop %v875
      %v877 = vmul.f32 %v849, 1.442695
      %v878 = vpow.pop %v877
      %v879 = vmul.f32 %v850, 1.442695
      %v880 = vpow.pop %v879
      %v881 = vmul.f32 %v851, 1.442695
      %v882 = vpow.pop %v881
      %v883 = vmul.f32 %v852, 1.442695
      %v884 = vpow.pop %v883
      %v885 = vadd.f32 %v854, 1.0
      %v886 = vadd.f32 %v856, 1.0
      %v887 = vadd.f32 %v858, 1.0
      %v888 = vadd.f32 %v860, 1.0
      %v889 = vadd.f32 %v862, 1.0
      %v890 = vadd.f32 %v864, 1.0
      %v891 = vadd.f32 %v866, 1.0
      %v892 = vadd.f32 %v868, 1.0
      %v893 = vadd.f32 %v870, 1.0
      %v894 = vadd.f32 %v872, 1.0
      %v895 = vadd.f32 %v874, 1.0
      %v896 = vadd.f32 %v876, 1.0
      %v897 = vadd.f32 %v878, 1.0
      %v898 = vadd.f32 %v880, 1.0
      %v899 = vadd.f32 %v882, 1.0
      %v900 = vadd.f32 %v884, 1.0
      %v901 = vrcp.pop %v885
      %v902 = vmul.f32 1.0, %v901
      %v903 = vrcp.pop %v886
      %v904 = vmul.f32 1.0, %v903
      %v905 = vrcp.pop %v887
      %v906 = vmul.f32 1.0, %v905
      %v907 = vrcp.pop %v888
      %v908 = vmul.f32 1.0, %v907
      %v909 = vrcp.pop %v889
      %v910 = vmul.f32 1.0, %v909
      %v911 = vrcp.pop %v890
      %v912 = vmul.f32 1.0, %v911
      %v913 = vrcp.pop %v891
      %v914 = vmul.f32 1.0, %v913
      %v915 = vrcp.pop %v892
      %v916 = vmul.f32 1.0, %v915
      %v917 = vrcp.pop %v893
      %v918 = vmul.f32 1.0, %v917
      %v919 = vrcp.pop %v894
      %v920 = vmul.f32 1.0, %v919
      %v921 = vrcp.pop %v895
      %v922 = vmul.f32 1.0, %v921
      %v923 = vrcp.pop %v896
      %v924 = vmul.f32 1.0, %v923
      %v925 = vrcp.pop %v897
      %v926 = vmul.f32 1.0, %v925
      %v927 = vrcp.pop %v898
      %v928 = vmul.f32 1.0, %v927
      %v929 = vrcp.pop %v899
      %v930 = vmul.f32 1.0, %v929
      %v931 = vrcp.pop %v900
      %v932 = vmul.f32 1.0, %v931
      %v933 = vmul.f32 %v902, %v822
      %v934 = vmul.f32 %v904, %v822
      %v935 = vmul.f32 %v906, %v824
      %v936 = vmul.f32 %v908, %v824
      %v937 = vmul.f32 %v910, %v826
      %v938 = vmul.f32 %v912, %v826
      %v939 = vmul.f32 %v914, %v828
      %v940 = vmul.f32 %v916, %v828
      %v941 = vmul.f32 %v918, %v830
      %v942 = vmul.f32 %v920, %v830
      %v943 = vmul.f32 %v922, %v832
      %v944 = vmul.f32 %v924, %v832
      %v945 = vmul.f32 %v926, %v834
      %v946 = vmul.f32 %v928, %v834
      %v947 = vmul.f32 %v930, %v836
      %v948 = vmul.f32 %v932, %v836
      %950 = vset.pattern.permute.xlu0 0
      %951 = vperm.xlu0 %950, %v274
      %v952 = vpop.permute.xlu0 %951
      %vm954 = vcmask 523264
      %v956 = vsel %vm954, %v273, 0
      %958 = vmatprep.subr.mxu0 %v934
      %959 = vmatpush1.msra.mxu0 %v933
      %960 = vmatprep.subr.mxu0 %v936
      %961 = vmatpush1.msra.mxu0 %v935
      %962 = vmatprep.subr.mxu0 %v938
      %963 = vmatpush1.msra.mxu0 %v937
      %964 = vmatprep.subr.mxu0 %v940
      %965 = vmatpush1.msra.mxu0 %v939
      %966 = vmatprep.subr.mxu0 %v942
      %967 = vmatpush1.msra.mxu0 %v941
      %968 = vmatprep.subr.mxu0 %v944
      %969 = vmatpush1.msra.mxu0 %v943
      %970 = vmatprep.subr.mxu0 %v946
      %971 = vmatpush1.msra.mxu0 %v945
      %972 = vmatprep.subr.mxu0 %v948
      %973 = vmatpush1.msra.mxu0 %v947
      %974 = vmatprep.subr.mxu0 0.0
      %975 = vmatpush1.msra.mxu0 0.0
      %976 = vmatprep.subr.mxu0 0.0
      %977 = vmatpush1.msra.mxu0 0.0
      %978 = vmatprep.subr.mxu0 0.0
      %979 = vmatpush1.msra.mxu0 0.0
      %980 = vmatprep.subr.mxu0 0.0
      %981 = vmatpush1.msra.mxu0 0.0
      %982 = vmatprep.subr.mxu0 0.0
      %983 = vmatpush1.msra.mxu0 0.0
      %984 = vmatprep.subr.mxu0 0.0
      %985 = vmatpush1.msra.mxu0 0.0
      %986 = vmatprep.subr.mxu0 0.0
      %987 = vmatpush1.msra.mxu0 0.0
      %988 = vmatprep.subr.mxu0 0.0
      %989 = vmatpush1.msra.mxu0 0.0
      %990 = vmatprep.subr.mxu0 0.0
      %991 = vmatpush1.msra.mxu0 0.0
      %992 = vmatprep.subr.mxu0 0.0
      %993 = vmatpush1.msra.mxu0 0.0
      %994 = vmatprep.subr.mxu0 0.0
      %995 = vmatpush1.msra.mxu0 0.0
      %996 = vmatprep.subr.mxu0 0.0
      %997 = vmatpush1.msra.mxu0 0.0
      %998 = vmatprep.subr.mxu0 0.0
      %999 = vmatpush1.msra.mxu0 0.0
      %1000 = vmatprep.subr.mxu0 0.0
      %1001 = vmatpush1.msra.mxu0 0.0
      %1002 = vmatprep.subr.mxu0 0.0
      %1003 = vmatpush1.msra.mxu0 0.0
      %1004 = vmatprep.subr.mxu0 0.0
      %1005 = vmatpush1.msra.mxu0 0.0
      %1006 = vmatprep.subr.mxu0 0.0
      %1007 = vmatpush1.msra.mxu0 0.0
      %1008 = vmatprep.subr.mxu0 0.0
      %1009 = vmatpush1.msra.mxu0 0.0
      %1010 = vmatprep.subr.mxu0 0.0
      %1011 = vmatpush1.msra.mxu0 0.0
      %1012 = vmatprep.subr.mxu0 0.0
      %1013 = vmatpush1.msra.mxu0 0.0
      %1014 = vmatprep.subr.mxu0 0.0
      %1015 = vmatpush1.msra.mxu0 0.0
      %1016 = vmatprep.subr.mxu0 0.0
      %1017 = vmatpush1.msra.mxu0 0.0
      %1018 = vmatprep.subr.mxu0 0.0
      %1019 = vmatpush1.msra.mxu0 0.0
      %1020 = vmatprep.subr.mxu0 0.0
      %1021 = vmatpush1.msra.mxu0 0.0
      %1022 = vmatprep.mubr.f32.mxu0 0.0
      %1023 = vmatmul.mubr.f32.gmra.mrb[0].mxu0 %v956
      %v1024 = vpop.f32.mrb[0].mxu0
      %v1025 = vadd.f32 %v952, %v1024
      %v1026 = vpop.f32.mrb[0].mxu0
      %v1027 = vadd.f32 %v952, %v1026
      %1028 = vdwg.mxu0
      %v1031 = vcombine.low %v1025, %v1027
      %1033 = vst [vmem:[%s224] sm:$0x77] %v1031
      %p1034 = scmp.lt.s32.totalorder %s16, 1
      %s1035 = scalar_select %p1034, %s16, 1
      %s1036 = smul.addr %s1035, 2
      %s1037 = smul.addr %s1036, 4
      %s1038 = scalar_lea.vmem %s5, %s1037
      // Predicated region
      $region41: #{aft_simple_forward.2} parent=39 // pred_check
        %p1039 = pneg %p144
      $region42: #{aft_simple_forward.2} parent=39 // pred_check_branch
        %1041 = sbr.rel (%p1039) target = $region44
      $region43: #{aft_simple_forward.2} parent=39 // pred_region
        _
      $region44: #{aft_simple_forward.2} parent=39 // pred_fallthru
        _
    $region40: #{aft_simple_forward.2} parent=5 // pred_fallthru
      _
    %p1042 = scmp.le.s32.totalorder 2, %s11
    // Predicated region
    $region45: #{aft_simple_forward.2} parent=5 // pred_check
      %p1043 = pneg %p1042
    $region46: #{aft_simple_forward.2} parent=5 // pred_check_branch
      %1045 = sbr.rel (%p1043) target = $region48
    $region47: #{aft_simple_forward.2} parent=5 // pred_region
      %s1046 = ssub.s32 %s11, 2
      // Predicated region
      $region49: #{aft_simple_forward.2} parent=47 // pred_check
        %p1047 = pneg %p150
      $region50: #{aft_simple_forward.2} parent=47 // pred_check_branch
        %1049 = sbr.rel (%p1047) target = $region52
      $region51: #{aft_simple_forward.2} parent=47 // pred_region
        %p1050 = scmp.lt.s32.totalorder %s17, 1
        %s1051 = scalar_select %p1050, %s17, 1
        %s1052 = smul.addr %s1051, 2
        %s1053 = smul.addr %s1052, 4
        %s1054 = scalar_lea.vmem %s5, %s1053
      $region52: #{aft_simple_forward.2} parent=47 // pred_fallthru
        _
    $region48: #{aft_simple_forward.2} parent=5 // pred_fallthru
      _
  $region6: #{aft_simple_forward.2} parent=0 // loop_footer
    %s15 = sadd.s32 1, %s11
  $region7: #{aft_simple_forward.2} parent=0 // loop_footer_branch
    %10 = sbr.rel target = $region3
  $region8: #{aft_simple_forward.2} parent=0 // loop_exit
    _

// kernel: aft_simple_forward.3
$region0: #{aft_simple_forward.3}
  #allocation0 [shape = 'u32[]', space=smem, size = 0x4, offset = 0x4, fixed_abs, tag = 'smem constant byte address 0x4 - core index']
  #allocation1 [shape = 'u32[144,128]{1,0:T(1,128)}', space=vmem, size = 0x12000, scoped, tag = 'internal scratch']
  %s0 = inlined_call_operand.vmem [shape: f32[48,32], index: 0, kind: input, shape index: {}]
  %s1 = inlined_call_operand.vmem [shape: f32[3,48], index: 1, kind: input, shape index: {}]
  %s2 = inlined_call_operand.vmem [shape: f32[3,1], index: 2, kind: input, shape index: {}]
  %s3 = inlined_call_operand.vmem [shape: f32[3,1], index: 3, kind: input, shape index: {}]
  %s4 = inlined_call_operand.vmem [shape: f32[3,1], index: 4, kind: input, shape index: {}]
  %s5 = inlined_call_operand.vmem [shape: f32[3,32], index: 5, kind: output, shape index: {}]
  %s6 = sld [smem:[#allocation0]]
  $region30: #{aft_simple_forward.3} parent=0
    _
  %s8 = ssub.s32 1, %s6
  %s9 = scalar_select 0, %s8, %s6
  // Predicated region
  $region2: #{aft_simple_forward.3} parent=0 // pred_check
    _
  $region3: #{aft_simple_forward.3} parent=0 // pred_check_branch
    %11 = sbr.rel (0) target = $region5
  $region4: #{aft_simple_forward.3} parent=0 // pred_region
    _
  $region5: #{aft_simple_forward.3} parent=0 // pred_fallthru
    _
  // Predicated region
  $region6: #{aft_simple_forward.3} parent=0 // pred_check
    _
  $region7: #{aft_simple_forward.3} parent=0 // pred_check_branch
    %13 = sbr.rel (0) target = $region9
  $region8: #{aft_simple_forward.3} parent=0 // pred_region
    _
  $region9: #{aft_simple_forward.3} parent=0 // pred_fallthru
    _
  // Predicated region
  $region10: #{aft_simple_forward.3} parent=0 // pred_check
    _
  $region11: #{aft_simple_forward.3} parent=0 // pred_check_branch
    %15 = sbr.rel (0) target = $region13
  $region12: #{aft_simple_forward.3} parent=0 // pred_region
    _
  $region13: #{aft_simple_forward.3} parent=0 // pred_fallthru
    _
  // Predicated region
  $region14: #{aft_simple_forward.3} parent=0 // pred_check
    _
  $region15: #{aft_simple_forward.3} parent=0 // pred_check_branch
    %17 = sbr.rel (0) target = $region17
  $region16: #{aft_simple_forward.3} parent=0 // pred_region
    _
  $region17: #{aft_simple_forward.3} parent=0 // pred_fallthru
    _
  // Predicated region
  $region18: #{aft_simple_forward.3} parent=0 // pred_check
    _
  $region19: #{aft_simple_forward.3} parent=0 // pred_check_branch
    %19 = sbr.rel (0) target = $region21
  $region20: #{aft_simple_forward.3} parent=0 // pred_region
    _
  $region21: #{aft_simple_forward.3} parent=0 // pred_fallthru
    _
  %v20 = vld [vmem:[%s1] sm:$0x7]
  %v21 = vld [vmem:[%s0] sm:$0xff]
  %v22 = vld [vmem:[%s0 + $0x8] sm:$0xff]
  %v23 = vld [vmem:[%s0 + $0x10] sm:$0xff]
  %v24 = vld [vmem:[%s0 + $0x18] sm:$0xff]
  %v25 = vld [vmem:[%s0 + $0x20] sm:$0xff]
  %v26 = vld [vmem:[%s0 + $0x28] sm:$0xff]
  %v27 = vld [vmem:[%s2] sm:$0x7]
  %29 = vset.pattern.permute.xlu0 0
  %30 = vperm.xlu0 %29, %v27
  %v31 = vpop.permute.xlu0 %30
  %vm33 = vcmask 392192
  %v35 = vsel %vm33, %v20, 0
  %37 = vmatprep.subr.mxu0 0.0
  %38 = vmatpush1.msra.mxu0 %v21
  %39 = vmatprep.subr.mxu0 0.0
  %40 = vmatpush1.msra.mxu0 %v22
  %41 = vmatprep.subr.mxu0 0.0
  %42 = vmatpush1.msra.mxu0 %v23
  %43 = vmatprep.subr.mxu0 0.0
  %44 = vmatpush1.msra.mxu0 %v24
  %45 = vmatprep.subr.mxu0 0.0
  %46 = vmatpush1.msra.mxu0 %v25
  %47 = vmatprep.subr.mxu0 0.0
  %48 = vmatpush1.msra.mxu0 %v26
  %49 = vmatprep.subr.mxu0 0.0
  %50 = vmatpush1.msra.mxu0 0.0
  %51 = vmatprep.subr.mxu0 0.0
  %52 = vmatpush1.msra.mxu0 0.0
  %53 = vmatprep.subr.mxu0 0.0
  %54 = vmatpush1.msra.mxu0 0.0
  %55 = vmatprep.subr.mxu0 0.0
  %56 = vmatpush1.msra.mxu0 0.0
  %57 = vmatprep.subr.mxu0 0.0
  %58 = vmatpush1.msra.mxu0 0.0
  %59 = vmatprep.subr.mxu0 0.0
  %60 = vmatpush1.msra.mxu0 0.0
  %61 = vmatprep.subr.mxu0 0.0
  %62 = vmatpush1.msra.mxu0 0.0
  %63 = vmatprep.subr.mxu0 0.0
  %64 = vmatpush1.msra.mxu0 0.0
  %65 = vmatprep.subr.mxu0 0.0
  %66 = vmatpush1.msra.mxu0 0.0
  %67 = vmatprep.subr.mxu0 0.0
  %68 = vmatpush1.msra.mxu0 0.0
  %69 = vmatprep.subr.mxu0 0.0
  %70 = vmatpush1.msra.mxu0 0.0
  %71 = vmatprep.subr.mxu0 0.0
  %72 = vmatpush1.msra.mxu0 0.0
  %73 = vmatprep.subr.mxu0 0.0
  %74 = vmatpush1.msra.mxu0 0.0
  %75 = vmatprep.subr.mxu0 0.0
  %76 = vmatpush1.msra.mxu0 0.0
  %77 = vmatprep.subr.mxu0 0.0
  %78 = vmatpush1.msra.mxu0 0.0
  %79 = vmatprep.subr.mxu0 0.0
  %80 = vmatpush1.msra.mxu0 0.0
  %81 = vmatprep.subr.mxu0 0.0
  %82 = vmatpush1.msra.mxu0 0.0
  %83 = vmatprep.subr.mxu0 0.0
  %84 = vmatpush1.msra.mxu0 0.0
  %85 = vmatprep.subr.mxu0 0.0
  %86 = vmatpush1.msra.mxu0 0.0
  %87 = vmatprep.subr.mxu0 0.0
  %88 = vmatpush1.msra.mxu0 0.0
  %89 = vmatprep.subr.mxu0 0.0
  %90 = vmatpush1.msra.mxu0 0.0
  %91 = vmatprep.subr.mxu0 0.0
  %92 = vmatpush1.msra.mxu0 0.0
  %93 = vmatprep.subr.mxu0 0.0
  %94 = vmatpush1.msra.mxu0 0.0
  %95 = vmatprep.subr.mxu0 0.0
  %96 = vmatpush1.msra.mxu0 0.0
  %97 = vmatprep.subr.mxu0 0.0
  %98 = vmatpush1.msra.mxu0 0.0
  %99 = vmatprep.subr.mxu0 0.0
  %100 = vmatpush1.msra.mxu0 0.0
  %101 = vmatprep.mubr.f32.mxu0 0.0
  %102 = vmatmul.mubr.f32.gmra.mrb[0].mxu0 %v35
  %v103 = vpop.f32.mrb[0].mxu0
  %v104 = vadd.f32 %v31, %v103
  %v105 = vpop.f32.mrb[0].mxu0
  %106 = vdwg.mxu0
  %vm107 = vcmask 256000
  %v108 = vsel %vm107, %v104, 0.0
  %v109 = vrot.slane %v108, 4
  %v110 = vadd.f32 %v108, %v109
  %v111 = vrot.slane %v110, 2
  %v112 = vadd.f32 %v110, %v111
  %v113 = vrot.slane %v112, 1
  %v114 = vadd.f32 %v112, %v113
  %v115 = vrcp.pop 3.0
  %v116 = vmul.f32 %v114, %v115
  %v117 = vsub.f32 %v104, %v116
  %v118 = vmul.f32 %v117, %v117
  %v119 = vsel %vm107, %v118, 0.0
  %v120 = vrot.slane %v119, 4
  %v121 = vadd.f32 %v119, %v120
  %v122 = vrot.slane %v121, 2
  %v123 = vadd.f32 %v121, %v122
  %v124 = vrot.slane %v123, 1
  %v125 = vadd.f32 %v123, %v124
  %v126 = vmul.f32 %v125, %v115
  %v127 = vadd.f32 %v126, 1e-06
  %v128 = vrsqrt.pop %v127
  %v129 = vmul.f32 %v117, %v128
  %v130 = vld [vmem:[%s3] sm:$0x7]
  %132 = vset.pattern.permute.xlu0 0
  %133 = vperm.xlu0 %132, %v130
  %v134 = vpop.permute.xlu0 %133
  %v136 = vmul.f32 %v134, %v129
  %v137 = vld [vmem:[%s4] sm:$0x7]
  %139 = vset.pattern.permute.xlu0 0
  %140 = vperm.xlu0 %139, %v137
  %v141 = vpop.permute.xlu0 %140
  %v143 = vadd.f32 %v136, %v141
  %144 = vst.msk [vmem:[%s5] sm:$0x7] %vm107, %v143
  // Predicated region
  $region22: #{aft_simple_forward.3} parent=0 // pred_check
    _
  $region23: #{aft_simple_forward.3} parent=0 // pred_check_branch
    %146 = sbr.rel (0) target = $region25
  $region24: #{aft_simple_forward.3} parent=0 // pred_region
    _
  $region25: #{aft_simple_forward.3} parent=0 // pred_fallthru
    _
  // Predicated region
  $region26: #{aft_simple_forward.3} parent=0 // pred_check
    _
  $region27: #{aft_simple_forward.3} parent=0 // pred_check_branch
    %148 = sbr.rel (0) target = $region29
  $region28: #{aft_simple_forward.3} parent=0 // pred_region
    _
  $region29: #{aft_simple_forward.3} parent=0 // pred_fallthru
    _

</llo_original>
